<compile_context>
chip_gen: v5e
topology: v5e:2x2
jax: 0.10.0
libtpu: 0.0.40
codegen_flags: <defaults>
</compile_context>

<pallas_src>
import jax
import jax.numpy as jnp
from jax.experimental import pallas as pl
from jax.experimental.pallas import tpu as pltpu

LANES = 128      # all feature dims are zero-padded to a full lane width
N_LAYERS = 3


# --------------------------------------------------------------------------
# Helpers
# --------------------------------------------------------------------------
def _round_up(x, m):
    return ((x + m - 1) // m) * m


def _pad2d(a, rows, cols, dtype=jnp.float32):
    out = jnp.zeros((rows, cols), jnp.float32)
    out = out.at[:a.shape[0], :a.shape[1]].set(a.astype(jnp.float32))
    return out.astype(dtype)


def _vmem_budget_bytes():
    """~85% of physical VMEM (generation-aware); conservative fallback."""
    try:
        cap = int(pltpu.get_tpu_info().vmem_capacity_bytes)
    except Exception:
        cap = 64 * 2 ** 20
    return int(0.85 * cap)


def _prep_weights(params, in_dim, hid_dim, out_dim):
    """Split each Linear(2*d_in, d_out) into W_agg / W_self, pad to 128 lanes.

    W_agg / W_self are stored bf16 (MXU-native on every generation); the bias
    stays f32 and is added in the f32 epilogue."""
    dims = [(in_dim, hid_dim), (hid_dim, hid_dim), (hid_dim, out_dim)]
    names = ["in", "hid", "out"]
    wa, ws, bs = [], [], []
    for (din, dout), nm in zip(dims, names):
        Wt = params[f"{nm}_w"]                       # [2*din, dout] (weight.T)
        b = params[f"{nm}_b"]                        # [dout]
        wa.append(_pad2d(Wt[:din], LANES, LANES))    # acts on aggregated feats
        ws.append(_pad2d(Wt[din:], LANES, LANES))    # acts on the node's own H
        bs.append(_pad2d(b.reshape(1, dout), 1, LANES))
    return (jnp.stack(wa).astype(jnp.bfloat16),      # [3, 128, 128] bf16
            jnp.stack(ws).astype(jnp.bfloat16),      # [3, 128, 128] bf16
            jnp.stack(bs))                           # [3, 1, 128]   f32


# --------------------------------------------------------------------------
# Fast path: adjacency fully VMEM-resident (read from HBM exactly once)
# --------------------------------------------------------------------------
def _forward_resident(M, n_feat, wa, ws, bs, N, out_dim, np_, tm, vmem_limit):
    ri = np_ // tm
    m_bf16 = _pad2d(M, np_, np_, jnp.bfloat16)
    h0 = _pad2d(n_feat, np_, LANES)

    def kernel(h0_ref, m_hbm, wa_ref, ws_ref, b_ref, o_ref,
               mbuf, hbuf, pbuf, m_sem):
        l = pl.program_id(0)            # layer
        i = pl.program_id(1)            # dst-row tile

        # One-shot staging at the very first grid step: M HBM->VMEM (kept
        # resident for all 3 layers) and the input features into region 0.
        @pl.when((l == 0) & (i == 0))
        def _():
            cp = pltpu.make_async_copy(m_hbm, mbuf, m_sem)
            cp.start()
            hbuf[pl.ds(0, np_), :] = h0_ref[...]
            cp.wait()

        cur = pl.multiple_of((l % 2) * np_, 128)        # region holding H_l
        nxt = pl.multiple_of(((l + 1) % 2) * np_, 128)  # region for H_{l+1}

        # P = H_l @ W_agg, computed once per layer and cached (bf16 operand
        # for the dominant M @ P matmul below).
        @pl.when(i == 0)
        def _():
            h_l = hbuf[pl.ds(cur, np_), :]
            pbuf[...] = jnp.dot(h_l.astype(jnp.bfloat16), wa_ref[0],
                                preferred_element_type=jnp.float32
                                ).astype(pbuf.dtype)

        row0 = pl.multiple_of(i * tm, 128)
        h_i = hbuf[pl.ds(pl.multiple_of(cur + i * tm, 128), tm), :]
        out = (jnp.dot(mbuf[pl.ds(row0, tm), :], pbuf[...],
                       preferred_element_type=jnp.float32)
               + jnp.dot(h_i.astype(jnp.bfloat16), ws_ref[0],
                         preferred_element_type=jnp.float32)
               + b_ref[0])

        @pl.when(l < N_LAYERS - 1)
        def _():
            h_next = jnp.maximum(out, 0.0)
            hbuf[pl.ds(pl.multiple_of(nxt + i * tm, 128), tm), :] = h_next
            o_ref[...] = h_next.astype(o_ref.dtype)

        @pl.when(l == N_LAYERS - 1)
        def _():
            o_ref[...] = out.astype(o_ref.dtype)

    flops = N_LAYERS * (2 * np_ * np_ * LANES + 4 * np_ * LANES * LANES)
    bytes_accessed = (np_ * np_ * 2                  # M read ONCE
                      + 2 * np_ * LANES * 4          # H0 in + output
                      + N_LAYERS * (2 * LANES * LANES * 2 + LANES * 4))

    out_padded = pl.pallas_call(
        kernel,
        out_shape=jax.ShapeDtypeStruct((np_, LANES), jnp.float32),
        grid_spec=pltpu.PrefetchScalarGridSpec(
            num_scalar_prefetch=0,
            grid=(N_LAYERS, ri),
            in_specs=[
                pl.BlockSpec((np_, LANES), lambda l, i: (0, 0)),          # H0
                pl.BlockSpec(memory_space=pl.ANY),                        # M (HBM)
                pl.BlockSpec((1, LANES, LANES), lambda l, i: (l, 0, 0)),  # W_agg
                pl.BlockSpec((1, LANES, LANES), lambda l, i: (l, 0, 0)),  # W_self
                pl.BlockSpec((1, 1, LANES), lambda l, i: (l, 0, 0)),      # bias
            ],
            out_specs=pl.BlockSpec((tm, LANES), lambda l, i: (i, 0)),
            scratch_shapes=[
                pltpu.VMEM((np_, np_), jnp.bfloat16),        # resident M
                pltpu.VMEM((2 * np_, LANES), jnp.float32),   # H ping-pong
                pltpu.VMEM((np_, LANES), jnp.bfloat16),      # P = H @ W_agg
                pltpu.SemaphoreType.DMA(()),                 # M copy semaphore
            ],
        ),
        compiler_params=pltpu.CompilerParams(
            # Layers / row tiles must run sequentially: later layers read all
            # rows of the VMEM-resident previous-layer H and the P cache.
            dimension_semantics=("arbitrary", "arbitrary"),
            vmem_limit_bytes=int(vmem_limit),
        ),
        cost_estimate=pl.CostEstimate(flops=int(flops), transcendentals=0,
                                      bytes_accessed=int(bytes_accessed)),
    )(h0, m_bf16, wa, ws, bs)
    return out_padded[:N, :out_dim]


# --------------------------------------------------------------------------
# Fallback: stream the adjacency tile-by-tile (large graphs)
# --------------------------------------------------------------------------
def _forward_streaming(M, n_feat, wa, ws, bs, N, out_dim, budget, *,
                       max_tile=1024):
    np_ = _round_up(N, max_tile)
    tm = tk = max_tile
    ri, ki = np_ // tm, np_ // tk
    m_bf16 = _pad2d(M, np_, np_, jnp.bfloat16)
    h0 = _pad2d(n_feat, np_, LANES)

    def kernel(h0_ref, m_ref, wa_ref, ws_ref, b_ref, o_ref, hbuf, pbuf, acc):
        l = pl.program_id(0)
        i = pl.program_id(1)
        k = pl.program_id(2)
        nk = pl.num_programs(2)

        @pl.when((l == 0) & (i == 0) & (k == 0))
        def _():
            hbuf[pl.ds(0, np_), :] = h0_ref[...]

        cur = pl.multiple_of((l % 2) * np_, 128)
        nxt = pl.multiple_of(((l + 1) % 2) * np_, 128)

        @pl.when(i == 0)
        def _():
            h_k = hbuf[pl.ds(pl.multiple_of(cur + k * tk, 128), tk), :]
            pbuf[pl.ds(pl.multiple_of(k * tk, 128), tk), :] = jnp.dot(
                h_k.astype(jnp.bfloat16), wa_ref[0],
                preferred_element_type=jnp.float32).astype(pbuf.dtype)

        @pl.when(k == 0)
        def _():
            acc[...] = jnp.zeros_like(acc)

        acc[...] += jnp.dot(
            m_ref[...], pbuf[pl.ds(pl.multiple_of(k * tk, 128), tk), :],
            preferred_element_type=jnp.float32)

        @pl.when(k == nk - 1)
        def _():
            h_i = hbuf[pl.ds(pl.multiple_of(cur + i * tm, 128), tm), :]
            out = (acc[...]
                   + jnp.dot(h_i.astype(jnp.bfloat16), ws_ref[0],
                             preferred_element_type=jnp.float32)
                   + b_ref[0])
            out = jnp.where(l < N_LAYERS - 1, jnp.maximum(out, 0.0), out)
            hbuf[pl.ds(pl.multiple_of(nxt + i * tm, 128), tm), :] = out
            o_ref[...] = out.astype(o_ref.dtype)

    flops = N_LAYERS * (2 * np_ * np_ * LANES + 4 * np_ * LANES * LANES)
    bytes_accessed = (N_LAYERS * np_ * np_ * 2 + 2 * np_ * LANES * 4
                      + N_LAYERS * (2 * LANES * LANES * 2 + LANES * 4))

    est = (3 * tm * tk * 2 + 2 * np_ * LANES * 4 + 2 * np_ * LANES * 4
           + np_ * LANES * 2 + tm * LANES * 4 + 2 * tm * LANES * 4
           + 4 * (2 * LANES * LANES * 2 + LANES * 4))
    vmem_limit = int(min(budget, max(est + (8 << 20), 32 * 2 ** 20)))

    out_padded = pl.pallas_call(
        kernel,
        out_shape=jax.ShapeDtypeStruct((np_, LANES), jnp.float32),
        grid_spec=pltpu.PrefetchScalarGridSpec(
            num_scalar_prefetch=0,
            grid=(N_LAYERS, ri, ki),
            in_specs=[
                pl.BlockSpec((np_, LANES), lambda l, i, k: (0, 0)),          # H0
                pl.BlockSpec((tm, tk), lambda l, i, k: (i, k),               # M
                             pipeline_mode=pl.Buffered(3)),
                pl.BlockSpec((1, LANES, LANES), lambda l, i, k: (l, 0, 0)),  # W_agg
                pl.BlockSpec((1, LANES, LANES), lambda l, i, k: (l, 0, 0)),  # W_self
                pl.BlockSpec((1, 1, LANES), lambda l, i, k: (l, 0, 0)),      # bias
            ],
            out_specs=pl.BlockSpec((tm, LANES), lambda l, i, k: (i, 0)),
            scratch_shapes=[
                pltpu.VMEM((2 * np_, LANES), jnp.float32),   # H ping-pong
                pltpu.VMEM((np_, LANES), jnp.bfloat16),      # P = H @ W_agg
                pltpu.VMEM((tm, LANES), jnp.float32),        # f32 accumulator
            ],
        ),
        compiler_params=pltpu.CompilerParams(
            dimension_semantics=("arbitrary", "arbitrary", "arbitrary"),
            vmem_limit_bytes=vmem_limit,
        ),
        cost_estimate=pl.CostEstimate(flops=int(flops), transcendentals=0,
                                      bytes_accessed=int(bytes_accessed)),
    )(h0, m_bf16, wa, ws, bs)
    return out_padded[:N, :out_dim]


# --------------------------------------------------------------------------
# Top-level forward: tile plan + resident-vs-streaming decision
# --------------------------------------------------------------------------
def dummy_gnn_forward(M, n_feat, params):
    """Forward of dummy_gnn_model.

    M      : [N, N] dense normalized adjacency (see build_norm_adj)
    n_feat : [N, in_dim]
    params : dict(in_w, in_b, hid_w, hid_b, out_w, out_b); W pre-transposed
             to [2*d_in, d_out] (PyTorch Linear weight.T).
    """
    N = M.shape[0]
    in_dim = n_feat.shape[1]
    hid_dim = params["in_b"].shape[0]
    out_dim = params["out_b"].shape[0]

    wa, ws, bs = _prep_weights(params, in_dim, hid_dim, out_dim)
    budget = _vmem_budget_bytes()

    # ---- resident-M plan (preferred) ----------------------------------------
    np_a = _round_up(N, 128)          # bf16 min tile is (16,128); keep lane-dense
    if np_a <= 512:
        tm_a = np_a
    else:
        np_a = _round_up(N, 512)
        tm_a = 512

    resident_need = (np_a * np_a * 2                 # resident M (bf16)
                     + 2 * np_a * LANES * 4          # H ping-pong (f32)
                     + np_a * LANES * 2              # P cache (bf16)
                     + 2 * np_a * LANES * 4          # H0 input block
                     + 2 * tm_a * LANES * 4          # output blocks
                     + 4 * (2 * LANES * LANES * 2 + LANES * 4)  # weights+bias
                     + 8 * tm_a * LANES * 4          # in-kernel temporaries
                     + (4 << 20))                    # Mosaic scratch margin

    if resident_need <= budget:
        return _forward_resident(M, n_feat, wa, ws, bs, N, out_dim,
                                 np_a, tm_a, vmem_limit=budget)

    # ---- large-N fallback: stream M tile-by-tile -----------------------------
    return _forward_streaming(M, n_feat, wa, ws, bs, N, out_dim, budget)


# --------------------------------------------------------------------------
# Glue: dense normalized (mean) adjacency from an edge list
# --------------------------------------------------------------------------
def build_norm_adj(src, dst, num_nodes, edge_weights=None):
    """M[v, u] = sum_{e: u->v} w_e / in_degree(v); zero-in-degree rows are 0.

    Matches DGL fn.copy_u / fn.u_mul_e + fn.mean: the mean divides by the
    *count* of incoming edges, independent of the edge weights."""
    z = jnp.zeros((num_nodes, num_nodes), jnp.float32)
    w = (jnp.ones(src.shape[0], jnp.float32)
         if edge_weights is None else edge_weights.astype(jnp.float32))
    Aw = z.at[dst, src].add(w)                                 # weighted incidence
    deg = z.at[dst, src].add(1.0).sum(axis=1, keepdims=True)   # in-degree counts
    return Aw / jnp.maximum(deg, 1.0)


# --------------------------------------------------------------------------
# Model params (shapes match nn.Linear(2*d_in, d_out), weight pre-transposed)
# --------------------------------------------------------------------------
def init_params(key, in_dim, hid_dim, out_dim):
    ks = jax.random.split(key, 6)

    def lin(kw, kb, d_in, d_out):
        W = 0.1 * jax.random.normal(kw, (2 * d_in, d_out), jnp.float32)
        b = 0.1 * jax.random.normal(kb, (d_out,), jnp.float32)
        return W, b

    in_w, in_b = lin(ks[0], ks[1], in_dim, hid_dim)
    hid_w, hid_b = lin(ks[2], ks[3], hid_dim, hid_dim)
    out_w, out_b = lin(ks[4], ks[5], hid_dim, out_dim)
    return dict(in_w=in_w, in_b=in_b, hid_w=hid_w, hid_b=hid_b,
                out_w=out_w, out_b=out_b)


# --------------------------------------------------------------------------
# Pure-JAX f32 reference (mirrors the PyTorch module exactly)
# --------------------------------------------------------------------------
def _ref_layer(M, H, Wt, b, relu):
    agg = M @ H
    out = jnp.concatenate([agg, H], axis=-1) @ Wt + b
    return jnp.maximum(out, 0.0) if relu else out


def _ref_forward(M, n_feat, p):
    h = _ref_layer(M, n_feat, p["in_w"], p["in_b"], True)
    h = _ref_layer(M, h, p["hid_w"], p["hid_b"], True)
    return _ref_layer(M, h, p["out_w"], p["out_b"], False)


if __name__ == "__main__":
    key = jax.random.PRNGKey(0)
    k_feat, k_src, k_dst, k_ew, k_par = jax.random.split(key, 5)

    num_nodes, num_edges = 16, 48
    in_dim, hid_dim, out_dim = 8, 32, 4

    n_feat = jax.random.normal(k_feat, (num_nodes, in_dim), jnp.float32)
    src = jax.random.randint(k_src, (num_edges,), 0, num_nodes)
    dst = jax.random.randint(k_dst, (num_edges,), 0, num_nodes)
    edge_weights = jax.random.uniform(k_ew, (num_edges,), jnp.float32)

    params = init_params(k_par, in_dim, hid_dim, out_dim)
    fwd = jax.jit(dummy_gnn_forward)

    # "edge mask" (weighted) path and e_weights=None path
    M_w = build_norm_adj(src, dst, num_nodes, edge_weights)
    M_u = build_norm_adj(src, dst, num_nodes, None)
    out_w = jax.block_until_ready(fwd(M_w, n_feat, params))
    out_u = jax.block_until_ready(fwd(M_u, n_feat, params))

    ref_w = _ref_forward(M_w, n_feat, params)
    ref_u = _ref_forward(M_u, n_feat, params)

    assert out_w.shape == (num_nodes, out_dim)
    assert out_u.shape == (num_nodes, out_dim)
    # bf16 adjacency / bf16 matmul operands => ~1% relative error over the
    # 3 layers vs the pure-f32 reference; accumulation and epilogue are f32.
    assert jnp.allclose(out_w, ref_w, atol=5e-2, rtol=5e-2), \
        float(jnp.max(jnp.abs(out_w - ref_w)))
    assert jnp.allclose(out_u, ref_u, atol=5e-2, rtol=5e-2), \
        float(jnp.max(jnp.abs(out_u - ref_u)))

    print("KERNEL_OK")
</pallas_src>

<mosaic_0001>
module attributes {stable_mosaic.version = 11 : i64} {
  func.func @kernel(%arg0: i32, %arg1: i32, %arg2: memref<128x128xf32, #tpu.memory_space<vmem>>, %arg3: memref<128x128xbf16, #tpu.memory_space<any>>, %arg4: memref<1x128x128xbf16, #tpu.memory_space<vmem>>, %arg5: memref<1x128x128xbf16, #tpu.memory_space<vmem>>, %arg6: memref<1x1x128xf32, #tpu.memory_space<vmem>>, %arg7: memref<128x128xf32, #tpu.memory_space<vmem>>, %arg8: memref<128x128xbf16, #tpu.memory_space<vmem>>, %arg9: memref<256x128xf32, #tpu.memory_space<vmem>>, %arg10: memref<128x128xbf16, #tpu.memory_space<vmem>>, %arg11: memref<!tpu.dma_semaphore, #tpu.memory_space<semaphore_mem>>) attributes {dimension_semantics = [#tpu.dimension_semantics<arbitrary>, #tpu.dimension_semantics<arbitrary>], iteration_bounds = array<i64: 3, 1>, scalar_prefetch = 0 : i64, scratch_operands = 4 : i64, tpu.core_type = #tpu.core_type<tc>, window_params = [{pipeline_mode = #tpu.pipeline_mode<synchronous>, transform_indices = @transform_0, window_bounds = array<i64: 128, 128>}, {}, {transform_indices = @transform_2, window_bounds = array<i64: 1, 128, 128>}, {transform_indices = @transform_3, window_bounds = array<i64: 1, 128, 128>}, {transform_indices = @transform_4, window_bounds = array<i64: 1, 1, 128>}, {transform_indices = @transform_5, window_bounds = array<i64: 128, 128>}]} {
    %c0_i32 = arith.constant 0 : i32
    %0 = arith.cmpi eq, %arg0, %c0_i32 : i32
    %c0_i32_0 = arith.constant 0 : i32
    %1 = arith.cmpi eq, %arg1, %c0_i32_0 : i32
    %2 = arith.andi %0, %1 : i1
    %3 = arith.extui %2 : i1 to i32
    %c0_i32_1 = arith.constant 0 : i32
    %4 = arith.cmpi ne, %3, %c0_i32_1 : i32
    scf.if %4 {
      tpu.enqueue_dma source(%arg3 : memref<128x128xbf16, #tpu.memory_space<any>>) target(%arg8 : memref<128x128xbf16, #tpu.memory_space<vmem>>) target_semaphore(%arg11 : memref<!tpu.dma_semaphore, #tpu.memory_space<semaphore_mem>>)
      %c0_32 = arith.constant 0 : index
      %c0_33 = arith.constant 0 : index
      %59 = vector.load %arg2[%c0_32, %c0_33] : memref<128x128xf32, #tpu.memory_space<vmem>>, vector<128x128xf32>
      %c0_34 = arith.constant 0 : index
      %c0_35 = arith.constant 0 : index
      %60 = vector.load %arg9[%c0_34, %c0_35] : memref<256x128xf32, #tpu.memory_space<vmem>>, vector<128x128xf32>
      tpu.vector_store %arg9[%c0_34, %c0_35], %59 {strides = array<i32>} : memref<256x128xf32, #tpu.memory_space<vmem>>, vector<128x128xf32>,
      tpu.wait_dma2 semaphore(%arg11 : memref<!tpu.dma_semaphore, #tpu.memory_space<semaphore_mem>>) src(%arg3 : memref<128x128xbf16, #tpu.memory_space<any>>) dst(%arg8 : memref<128x128xbf16, #tpu.memory_space<vmem>>)
    } else {
    }
    %c2_i32 = arith.constant 2 : i32
    %c0_i32_2 = arith.constant 0 : i32
    %5 = arith.cmpi eq, %c2_i32, %c0_i32_2 : i32
    %c1_i32 = arith.constant 1 : i32
    %6 = arith.select %5, %c1_i32, %c2_i32 : i32
    %7 = arith.remsi %arg0, %6 : i32
    %c0_i32_3 = arith.constant 0 : i32
    %8 = arith.cmpi ne, %7, %c0_i32_3 : i32
    %c0_i32_4 = arith.constant 0 : i32
    %9 = arith.cmpi slt, %7, %c0_i32_4 : i32
    %c0_i32_5 = arith.constant 0 : i32
    %10 = arith.cmpi slt, %6, %c0_i32_5 : i32
    %11 = arith.xori %9, %10 : i1
    %12 = arith.andi %11, %8 : i1
    %13 = arith.addi %7, %6 : i32
    %14 = arith.select %12, %13, %7 : i32
    %c128_i32 = arith.constant 128 : i32
    %15 = arith.muli %14, %c128_i32 : i32
    %16 = tpu.assume_multiple %15, 128 : i32
    %c1_i32_6 = arith.constant 1 : i32
    %17 = arith.addi %arg0, %c1_i32_6 : i32
    %c2_i32_7 = arith.constant 2 : i32
    %c0_i32_8 = arith.constant 0 : i32
    %18 = arith.cmpi eq, %c2_i32_7, %c0_i32_8 : i32
    %c1_i32_9 = arith.constant 1 : i32
    %19 = arith.select %18, %c1_i32_9, %c2_i32_7 : i32
    %20 = arith.remsi %17, %19 : i32
    %c0_i32_10 = arith.constant 0 : i32
    %21 = arith.cmpi ne, %20, %c0_i32_10 : i32
    %c0_i32_11 = arith.constant 0 : i32
    %22 = arith.cmpi slt, %20, %c0_i32_11 : i32
    %c0_i32_12 = arith.constant 0 : i32
    %23 = arith.cmpi slt, %19, %c0_i32_12 : i32
    %24 = arith.xori %22, %23 : i1
    %25 = arith.andi %24, %21 : i1
    %26 = arith.addi %20, %19 : i32
    %27 = arith.select %25, %26, %20 : i32
    %c128_i32_13 = arith.constant 128 : i32
    %28 = arith.muli %27, %c128_i32_13 : i32
    %29 = tpu.assume_multiple %28, 128 : i32
    %c0_i32_14 = arith.constant 0 : i32
    %30 = arith.cmpi eq, %arg1, %c0_i32_14 : i32
    %31 = arith.extui %30 : i1 to i32
    %c0_i32_15 = arith.constant 0 : i32
    %32 = arith.cmpi ne, %31, %c0_i32_15 : i32
    scf.if %32 {
      %59 = arith.index_cast %16 : i32 to index
      %c0_32 = arith.constant 0 : index
      %60 = vector.load %arg9[%59, %c0_32] : memref<256x128xf32, #tpu.memory_space<vmem>>, vector<128x128xf32>
      %61 = arith.truncf %60 : vector<128x128xf32> to vector<128x128xbf16>
      %c0_33 = arith.constant 0 : index
      %c0_34 = arith.constant 0 : index
      %c0_35 = arith.constant 0 : index
      %62 = vector.load %arg4[%c0_33, %c0_34, %c0_35] : memref<1x128x128xbf16, #tpu.memory_space<vmem>>, vector<1x128x128xbf16>
      %63 = vector.shape_cast %62 : vector<1x128x128xbf16> to vector<128x128xbf16>
      %cst_36 = arith.constant dense<0.000000e+00> : vector<128x128xf32>
      %64 = tpu.matmul %61, %63, %cst_36 {dimension_numbers = #tpu.dot_dimension_numbers<[1], [0], [0], [1], [0, 0, 1, 1], [], []>} : vector<128x128xbf16>, vector<128x128xbf16>, vector<128x128xf32> -> vector<128x128xf32>
      %65 = arith.truncf %64 : vector<128x128xf32> to vector<128x128xbf16>
      %c0_37 = arith.constant 0 : index
      %c0_38 = arith.constant 0 : index
      %66 = vector.load %arg10[%c0_37, %c0_38] : memref<128x128xbf16, #tpu.memory_space<vmem>>, vector<128x128xbf16>
      tpu.vector_store %arg10[%c0_37, %c0_38], %65 {strides = array<i32>} : memref<128x128xbf16, #tpu.memory_space<vmem>>, vector<128x128xbf16>,
    } else {
    }
    %c128_i32_16 = arith.constant 128 : i32
    %33 = arith.muli %arg1, %c128_i32_16 : i32
    %34 = tpu.assume_multiple %33, 128 : i32
    %c128_i32_17 = arith.constant 128 : i32
    %35 = arith.muli %arg1, %c128_i32_17 : i32
    %36 = arith.addi %16, %35 : i32
    %37 = tpu.assume_multiple %36, 128 : i32
    %38 = arith.index_cast %37 : i32 to index
    %c0 = arith.constant 0 : index
    %39 = vector.load %arg9[%38, %c0] : memref<256x128xf32, #tpu.memory_space<vmem>>, vector<128x128xf32>
    %40 = arith.index_cast %34 : i32 to index
    %c0_18 = arith.constant 0 : index
    %41 = vector.load %arg8[%40, %c0_18] : memref<128x128xbf16, #tpu.memory_space<vmem>>, vector<128x128xbf16>
    %c0_19 = arith.constant 0 : index
    %c0_20 = arith.constant 0 : index
    %42 = vector.load %arg10[%c0_19, %c0_20] : memref<128x128xbf16, #tpu.memory_space<vmem>>, vector<128x128xbf16>
    %cst = arith.constant dense<0.000000e+00> : vector<128x128xf32>
    %43 = tpu.matmul %41, %42, %cst {dimension_numbers = #tpu.dot_dimension_numbers<[1], [0], [0], [1], [0, 0, 1, 1], [], []>} : vector<128x128xbf16>, vector<128x128xbf16>, vector<128x128xf32> -> vector<128x128xf32>
    %44 = arith.truncf %39 : vector<128x128xf32> to vector<128x128xbf16>
    %c0_21 = arith.constant 0 : index
    %c0_22 = arith.constant 0 : index
    %c0_23 = arith.constant 0 : index
    %45 = vector.load %arg5[%c0_21, %c0_22, %c0_23] : memref<1x128x128xbf16, #tpu.memory_space<vmem>>, vector<1x128x128xbf16>
    %46 = vector.shape_cast %45 : vector<1x128x128xbf16> to vector<128x128xbf16>
    %cst_24 = arith.constant dense<0.000000e+00> : vector<128x128xf32>
    %47 = tpu.matmul %44, %46, %cst_24 {dimension_numbers = #tpu.dot_dimension_numbers<[1], [0], [0], [1], [0, 0, 1, 1], [], []>} : vector<128x128xbf16>, vector<128x128xbf16>, vector<128x128xf32> -> vector<128x128xf32>
    %48 = arith.addf %43, %47 : vector<128x128xf32>
    %c0_25 = arith.constant 0 : index
    %c0_26 = arith.constant 0 : index
    %c0_27 = arith.constant 0 : index
    %49 = vector.load %arg6[%c0_25, %c0_26, %c0_27] : memref<1x1x128xf32, #tpu.memory_space<vmem>>, vector<1x1x128xf32>
    %50 = vector.shape_cast %49 : vector<1x1x128xf32> to vector<1x128xf32>
    %51 = vector.broadcast %50 : vector<1x128xf32> to vector<128x128xf32>
    %52 = arith.addf %48, %51 : vector<128x128xf32>
    %c2_i32_28 = arith.constant 2 : i32
    %53 = arith.cmpi slt, %arg0, %c2_i32_28 : i32
    %54 = arith.extui %53 : i1 to i32
    %c0_i32_29 = arith.constant 0 : i32
    %55 = arith.cmpi ne, %54, %c0_i32_29 : i32
    scf.if %55 {
      %cst_32 = arith.constant 0.000000e+00 : f32
      %59 = vector.broadcast %cst_32 : f32 to vector<128x128xf32>
      %60 = arith.maximumf %52, %59 : vector<128x128xf32>
      %c128_i32_33 = arith.constant 128 : i32
      %61 = arith.muli %arg1, %c128_i32_33 : i32
      %62 = arith.addi %29, %61 : i32
      %63 = tpu.assume_multiple %62, 128 : i32
      %64 = arith.index_cast %63 : i32 to index
      %c0_34 = arith.constant 0 : index
      %65 = vector.load %arg9[%64, %c0_34] : memref<256x128xf32, #tpu.memory_space<vmem>>, vector<128x128xf32>
      tpu.vector_store %arg9[%64, %c0_34], %60 {strides = array<i32>} : memref<256x128xf32, #tpu.memory_space<vmem>>, vector<128x128xf32>,
      %c0_35 = arith.constant 0 : index
      %c0_36 = arith.constant 0 : index
      %66 = vector.load %arg7[%c0_35, %c0_36] : memref<128x128xf32, #tpu.memory_space<vmem>>, vector<128x128xf32>
      tpu.vector_store %arg7[%c0_35, %c0_36], %60 {strides = array<i32>} : memref<128x128xf32, #tpu.memory_space<vmem>>, vector<128x128xf32>,
    } else {
    }
    %c2_i32_30 = arith.constant 2 : i32
    %56 = arith.cmpi eq, %arg0, %c2_i32_30 : i32
    %57 = arith.extui %56 : i1 to i32
    %c0_i32_31 = arith.constant 0 : i32
    %58 = arith.cmpi ne, %57, %c0_i32_31 : i32
    scf.if %58 {
      %c0_32 = arith.constant 0 : index
      %c0_33 = arith.constant 0 : index
      %59 = vector.load %arg7[%c0_32, %c0_33] : memref<128x128xf32, #tpu.memory_space<vmem>>, vector<128x128xf32>
      tpu.vector_store %arg7[%c0_32, %c0_33], %52 {strides = array<i32>} : memref<128x128xf32, #tpu.memory_space<vmem>>, vector<128x128xf32>,
    } else {
    }
    return
  }
  func.func @transform_0(%arg0: i32, %arg1: i32) -> (i32, i32) {
    %c0_i32 = arith.constant 0 : i32
    %c0_i32_0 = arith.constant 0 : i32
    %c0_i32_1 = arith.constant 0 : i32
    return %c0_i32, %c0_i32_0 : i32, i32
  }
  func.func @transform_2(%arg0: i32, %arg1: i32) -> (i32, i32, i32) {
    %c0_i32 = arith.constant 0 : i32
    %c0_i32_0 = arith.constant 0 : i32
    %c0_i32_1 = arith.constant 0 : i32
    return %arg0, %c0_i32, %c0_i32_0 : i32, i32, i32
  }
  func.func @transform_3(%arg0: i32, %arg1: i32) -> (i32, i32, i32) {
    %c0_i32 = arith.constant 0 : i32
    %c0_i32_0 = arith.constant 0 : i32
    %c0_i32_1 = arith.constant 0 : i32
    return %arg0, %c0_i32, %c0_i32_0 : i32, i32, i32
  }
  func.func @transform_4(%arg0: i32, %arg1: i32) -> (i32, i32, i32) {
    %c0_i32 = arith.constant 0 : i32
    %c0_i32_0 = arith.constant 0 : i32
    %c0_i32_1 = arith.constant 0 : i32
    return %arg0, %c0_i32, %c0_i32_0 : i32, i32, i32
  }
  func.func @transform_5(%arg0: i32, %arg1: i32) -> (i32, i32) {
    %c0_i32 = arith.constant 0 : i32
    %c0_i32_0 = arith.constant 0 : i32
    return %arg1, %c0_i32 : i32, i32
  }
}

</mosaic_0001>

<llo_original>
// kernel: dummy_gnn_forward.1
$region0: #{dummy_gnn_forward.1}
  #allocation0 [shape = 'u32[]', space=smem, size = 0x4, offset = 0x4, fixed_abs, tag = 'smem constant byte address 0x4 - core index']
  #allocation1 [shape = 'u32[72,128]{1,0:T(1,128)}', space=vmem, size = 0x9000, scoped, tag = 'internal scratch']
  #allocation2 [shape = 'bf16[128,128]{1,0:T(8,128)(2,1)}', space=vmem, size = 0x8000, scoped, tag = 'scratch operand']
  #allocation3 [shape = 'f32[256,128]{1,0:T(8,128)}', space=vmem, size = 0x20000, scoped, tag = 'scratch operand']
  #allocation4 [shape = 'bf16[128,128]{1,0:T(8,128)(2,1)}', space=vmem, size = 0x8000, scoped, tag = 'scratch operand']
  #allocation5 [shape = 's32[1]{0}', space=sflag, size = 0x4, scoped, tag = 'scratch operand']
  #allocation6 [shape = 's32[]', space=sflag, size = 0x4, offset = 0, fixed_abs, tag = 'sflag constant byte address 0x0 - dummy sync flag']
  %s0 = inlined_call_operand.vmem [shape: f32[128,128], index: 0, kind: input, shape index: {}]
  %s1 = inlined_call_operand.vmem [shape: bf16[128,128], index: 1, kind: input, shape index: {}]
  %s2 = inlined_call_operand.vmem [shape: bf16[3,128,128], index: 2, kind: input, shape index: {}]
  %s3 = inlined_call_operand.vmem [shape: bf16[3,128,128], index: 3, kind: input, shape index: {}]
  %s4 = inlined_call_operand.vmem [shape: f32[3,1,128], index: 4, kind: input, shape index: {}]
  %s5 = inlined_call_operand.vmem [shape: f32[128,128], index: 5, kind: output, shape index: {}]
  %s6 = sld [smem:[#allocation0]]
  $region84: #{dummy_gnn_forward.1} parent=0
    _
  %s8 = ssub.s32 1, %s6
  %s9 = scalar_select 0, %s8, %s6
  loop: start=0, step=1, limit=5
  $region2: #{dummy_gnn_forward.1} parent=0 // loop_pre_header
    _
  $region3: #{dummy_gnn_forward.1} parent=0 // loop_header
    %s11 = sphi 0, %s15
    %p12 = scmp.ge.s32.totalorder %s11, 5
    %s18 = sphi 0, %s30
    %s19 = sphi 0, %s26
    %s20 = sphi 0, %s18
    %s21 = sphi 0, %s19
    %s22 = sphi 0, %s20
    %s23 = sphi 0, %s21
    %s31 = sphi 0, %s31
    %s33 = sphi 0, %s31
    %s34 = sphi 0, %s33
    %s48 = sphi 0, %s34
    %s54 = sphi 0, %s56
    %s57 = sphi 0, %s54
    %s58 = sphi 0, %s57
    %s74 = sphi 0, %s58
    %s80 = sphi 0, %s82
    %s83 = sphi 0, %s80
    %s84 = sphi 0, %s83
    %s100 = sphi 0, %s84
    %s106 = sphi 0, %s108
    %s109 = sphi 0, %s106
    %s110 = sphi 0, %s109
    %s126 = sphi 0, %s110
    %s132 = sphi 0, %s134
    %s135 = sphi 0, %s132
    %s136 = sphi 0, %s135
    %s152 = sphi 0, %s136
  $region4: #{dummy_gnn_forward.1} parent=0 // loop_header_branch
    %14 = sbr.rel (%p12) target = $region8
  $region5: #{dummy_gnn_forward.1} parent=0 // loop_body
    %s16 = ssub.s32 %s11, 1
    %s17 = ssub.s32 %s11, 2
    %s24 = sadd.s32 1, %s19
    %p25 = scmp.ge.s32.totalorder %s24, 1
    %s26 = scalar_select %p25, 0, %s24
    %s27 = sadd.s32 1, %s18
    %s28 = scalar_select %p25, %s27, %s18
    %p29 = scmp.ge.s32.totalorder %s28, 3
    %s30 = scalar_select %p29, 0, %s28
    %s32 = sadd.s32 %s31, 1
    %p35 = scmp.eq.s32.totalorder %s11, 2
    %p36 = scmp.ne.s32.totalorder %s31, %s33
    %p37 = scmp.eq.s32.totalorder %s11, 0
    %p38 = por %p36, %p37
    %p39 = scmp.ne.s32.totalorder %s31, %s33
    %p40 = scmp.eq.s32.totalorder %s16, 2
    %p41 = por %p39, %p40
    %p42 = scmp.ne.s32.totalorder %s33, %s34
    %p43 = scmp.eq.s32.totalorder %s16, 0
    %p44 = por %p42, %p43
    %p45 = scmp.ne.s32.totalorder %s33, %s34
    %p46 = scmp.eq.s32.totalorder %s17, 2
    %p47 = por %p45, %p46
    %p49 = scmp.ne.s32.totalorder %s34, %s48
    %p50 = scmp.eq.s32.totalorder %s17, 0
    %p51 = por %p49, %p50
    %s52 = ssub.s32 %s18, %s30
    %p53 = scmp.eq.s32.totalorder %s52, 0
    %s55 = sadd.s32 %s54, 1
    %s56 = scalar_select %p53, %s54, %s55
    %p59 = pneg %p53
    %p60 = scmp.eq.s32.totalorder %s11, 2
    %p61 = por %p59, %p60
    %p62 = scmp.ne.s32.totalorder %s54, %s57
    %p63 = scmp.eq.s32.totalorder %s11, 0
    %p64 = por %p62, %p63
    %p65 = scmp.ne.s32.totalorder %s54, %s57
    %p66 = scmp.eq.s32.totalorder %s16, 2
    %p67 = por %p65, %p66
    %p68 = scmp.ne.s32.totalorder %s57, %s58
    %p69 = scmp.eq.s32.totalorder %s16, 0
    %p70 = por %p68, %p69
    %p71 = scmp.ne.s32.totalorder %s57, %s58
    %p72 = scmp.eq.s32.totalorder %s17, 2
    %p73 = por %p71, %p72
    %p75 = scmp.ne.s32.totalorder %s58, %s74
    %p76 = scmp.eq.s32.totalorder %s17, 0
    %p77 = por %p75, %p76
    %s78 = ssub.s32 %s18, %s30
    %p79 = scmp.eq.s32.totalorder %s78, 0
    %s81 = sadd.s32 %s80, 1
    %s82 = scalar_select %p79, %s80, %s81
    %p85 = pneg %p79
    %p86 = scmp.eq.s32.totalorder %s11, 2
    %p87 = por %p85, %p86
    %p88 = scmp.ne.s32.totalorder %s80, %s83
    %p89 = scmp.eq.s32.totalorder %s11, 0
    %p90 = por %p88, %p89
    %p91 = scmp.ne.s32.totalorder %s80, %s83
    %p92 = scmp.eq.s32.totalorder %s16, 2
    %p93 = por %p91, %p92
    %p94 = scmp.ne.s32.totalorder %s83, %s84
    %p95 = scmp.eq.s32.totalorder %s16, 0
    %p96 = por %p94, %p95
    %p97 = scmp.ne.s32.totalorder %s83, %s84
    %p98 = scmp.eq.s32.totalorder %s17, 2
    %p99 = por %p97, %p98
    %p101 = scmp.ne.s32.totalorder %s84, %s100
    %p102 = scmp.eq.s32.totalorder %s17, 0
    %p103 = por %p101, %p102
    %s104 = ssub.s32 %s18, %s30
    %p105 = scmp.eq.s32.totalorder %s104, 0
    %s107 = sadd.s32 %s106, 1
    %s108 = scalar_select %p105, %s106, %s107
    %p111 = pneg %p105
    %p112 = scmp.eq.s32.totalorder %s11, 2
    %p113 = por %p111, %p112
    %p114 = scmp.ne.s32.totalorder %s106, %s109
    %p115 = scmp.eq.s32.totalorder %s11, 0
    %p116 = por %p114, %p115
    %p117 = scmp.ne.s32.totalorder %s106, %s109
    %p118 = scmp.eq.s32.totalorder %s16, 2
    %p119 = por %p117, %p118
    %p120 = scmp.ne.s32.totalorder %s109, %s110
    %p121 = scmp.eq.s32.totalorder %s16, 0
    %p122 = por %p120, %p121
    %p123 = scmp.ne.s32.totalorder %s109, %s110
    %p124 = scmp.eq.s32.totalorder %s17, 2
    %p125 = por %p123, %p124
    %p127 = scmp.ne.s32.totalorder %s110, %s126
    %p128 = scmp.eq.s32.totalorder %s17, 0
    %p129 = por %p127, %p128
    %s130 = ssub.s32 %s19, %s26
    %p131 = scmp.eq.s32.totalorder %s130, 0
    %s133 = sadd.s32 %s132, 1
    %s134 = scalar_select %p131, %s132, %s133
    %p137 = pneg %p131
    %p138 = scmp.eq.s32.totalorder %s11, 2
    %p139 = por %p137, %p138
    %p140 = scmp.ne.s32.totalorder %s132, %s135
    %p141 = scmp.eq.s32.totalorder %s11, 0
    %p142 = por %p140, %p141
    %p143 = scmp.ne.s32.totalorder %s132, %s135
    %p144 = scmp.eq.s32.totalorder %s16, 2
    %p145 = por %p143, %p144
    %p146 = scmp.ne.s32.totalorder %s135, %s136
    %p147 = scmp.eq.s32.totalorder %s16, 0
    %p148 = por %p146, %p147
    %p149 = scmp.ne.s32.totalorder %s135, %s136
    %p150 = scmp.eq.s32.totalorder %s17, 2
    %p151 = por %p149, %p150
    %p153 = scmp.ne.s32.totalorder %s136, %s152
    %p154 = scmp.eq.s32.totalorder %s17, 0
    %p155 = por %p153, %p154
    %p156 = scmp.le.s32.totalorder 1, %s11
    %p157 = scmp.lt.s32.totalorder %s11, 4
    %p158 = pnand %p156, %p157
    %p159 = pneg %p158
    // Predicated region
    $region9: #{dummy_gnn_forward.1} parent=5 // pred_check
      _
    $region10: #{dummy_gnn_forward.1} parent=5 // pred_check_branch
      %161 = sbr.rel (%p158) target = $region12
    $region11: #{dummy_gnn_forward.1} parent=5 // pred_region
      %s162 = ssub.s32 %s11, 1
      // Predicated region
      $region13: #{dummy_gnn_forward.1} parent=11 // pred_check
        %p163 = pneg %p44
      $region14: #{dummy_gnn_forward.1} parent=11 // pred_check_branch
        %165 = sbr.rel (%p163) target = $region16
      $region15: #{dummy_gnn_forward.1} parent=11 // pred_region
        _
      $region16: #{dummy_gnn_forward.1} parent=11 // pred_fallthru
        _
    $region12: #{dummy_gnn_forward.1} parent=5 // pred_fallthru
      _
    %p166 = scmp.lt.s32.totalorder %s11, 3
    // Predicated region
    $region17: #{dummy_gnn_forward.1} parent=5 // pred_check
      %p167 = pneg %p166
    $region18: #{dummy_gnn_forward.1} parent=5 // pred_check_branch
      %169 = sbr.rel (%p167) target = $region20
    $region19: #{dummy_gnn_forward.1} parent=5 // pred_region
      // Predicated region
      $region21: #{dummy_gnn_forward.1} parent=19 // pred_check
        %p170 = pneg %p64
      $region22: #{dummy_gnn_forward.1} parent=19 // pred_check_branch
        %172 = sbr.rel (%p170) target = $region24
      $region23: #{dummy_gnn_forward.1} parent=19 // pred_region
        %p173 = scmp.lt.s32.totalorder %s18, 2
        %s174 = scalar_select %p173, %s18, 2
        %s175 = smul.addr %s174, 16
        %s176 = smul.addr %s175, 4
        %s177 = scalar_lea.vmem %s2, %s176
      $region24: #{dummy_gnn_forward.1} parent=19 // pred_fallthru
        _
      // Predicated region
      $region25: #{dummy_gnn_forward.1} parent=19 // pred_check
        %p178 = pneg %p90
      $region26: #{dummy_gnn_forward.1} parent=19 // pred_check_branch
        %180 = sbr.rel (%p178) target = $region28
      $region27: #{dummy_gnn_forward.1} parent=19 // pred_region
        %p181 = scmp.lt.s32.totalorder %s18, 2
        %s182 = scalar_select %p181, %s18, 2
        %s183 = smul.addr %s182, 16
        %s184 = smul.addr %s183, 4
        %s185 = scalar_lea.vmem %s3, %s184
      $region28: #{dummy_gnn_forward.1} parent=19 // pred_fallthru
        _
      // Predicated region
      $region29: #{dummy_gnn_forward.1} parent=19 // pred_check
        %p186 = pneg %p116
      $region30: #{dummy_gnn_forward.1} parent=19 // pred_check_branch
        %188 = sbr.rel (%p186) target = $region32
      $region31: #{dummy_gnn_forward.1} parent=19 // pred_region
        %p189 = scmp.lt.s32.totalorder %s18, 2
        %s190 = scalar_select %p189, %s18, 2
        %s191 = scalar_lea.vmem %s4, %s190
      $region32: #{dummy_gnn_forward.1} parent=19 // pred_fallthru
        _
    $region20: #{dummy_gnn_forward.1} parent=5 // pred_fallthru
      _
    %p192 = scmp.le.s32.totalorder 1, %s11
    %p193 = scmp.lt.s32.totalorder %s11, 4
    %p194 = pnand %p192, %p193
    %p195 = pneg %p194
    // Predicated region
    $region33: #{dummy_gnn_forward.1} parent=5 // pred_check
      _
    $region34: #{dummy_gnn_forward.1} parent=5 // pred_check_branch
      %197 = sbr.rel (%p194) target = $region36
    $region35: #{dummy_gnn_forward.1} parent=5 // pred_region
      %s198 = ssub.s32 %s11, 1
      %p199 = pneg %p44
      %p200 = pneg %p41
      %p201 = scmp.lt.s32.totalorder %s20, 2
      %s202 = scalar_select %p201, %s20, 2
      %s203 = smul.addr %s202, 16
      %s204 = smul.addr %s203, 4
      %s205 = scalar_lea.vmem %s2, %s204
      %p206 = pneg %p70
      %p207 = pneg %p67
      %p208 = scmp.lt.s32.totalorder %s20, 2
      %s209 = scalar_select %p208, %s20, 2
      %s210 = smul.addr %s209, 16
      %s211 = smul.addr %s210, 4
      %s212 = scalar_lea.vmem %s3, %s211
      %p213 = pneg %p96
      %p214 = pneg %p93
      %p215 = scmp.lt.s32.totalorder %s20, 2
      %s216 = scalar_select %p215, %s20, 2
      %s217 = scalar_lea.vmem %s4, %s216
      %p218 = pneg %p122
      %p219 = pneg %p119
      %p220 = pneg %p148
      %p221 = pneg %p145
      %s222 = smul.u32 16, %s21
      %p223 = scmp.lt.s32.totalorder %s222, 15
      %s224 = scalar_select %p223, %s222, 15
      %s225 = smul.addr %s224, 8
      %s226 = scalar_lea.vmem %s5, %s225
      %p227 = scmp.lt.s32.totalorder %s20, 2
      %s228 = scalar_select %p227, %s20, 2
      %s229 = smul.addr %s228, 16
      %s230 = smul.addr %s229, 4
      %s231 = scalar_lea.vmem %s2, %s230
      %p232 = scmp.lt.s32.totalorder %s20, 2
      %s233 = scalar_select %p232, %s20, 2
      %s234 = smul.addr %s233, 16
      %s235 = smul.addr %s234, 4
      %s236 = scalar_lea.vmem %s3, %s235
      %p237 = scmp.lt.s32.totalorder %s20, 2
      %s238 = scalar_select %p237, %s20, 2
      %s239 = scalar_lea.vmem %s4, %s238
      %s240 = smul.u32 16, %s21
      %p241 = scmp.lt.s32.totalorder %s240, 15
      %s242 = scalar_select %p241, %s240, 15
      %s243 = smul.addr %s242, 8
      %s244 = scalar_lea.vmem %s5, %s243
      %s245 = smul.u32 16, %s21
      %p246 = scmp.eq.s32.totalorder %s20, 0
      %p247 = scmp.eq.s32.totalorder %s21, 0
      %p248 = pnand %p246, %p247
      %p249 = pneg %p248
      // Predicated region
      $region37: #{dummy_gnn_forward.1} parent=35 // pred_check
        _
      $region38: #{dummy_gnn_forward.1} parent=35 // pred_check_branch
        %251 = sbr.rel (%p248) target = $region40
      $region39: #{dummy_gnn_forward.1} parent=35 // pred_region
        // Predicated region
        $region41: #{dummy_gnn_forward.1} parent=39 // pred_check
          _
        $region42: #{dummy_gnn_forward.1} parent=39 // pred_check_branch
          %253 = sbr.rel (0) target = $region44
        $region43: #{dummy_gnn_forward.1} parent=39 // pred_region
          loop: start=0, step=1, limit=1
          $region45: #{dummy_gnn_forward.1} parent=43 // loop_pre_header
            _
          $region46: #{dummy_gnn_forward.1} parent=43 // loop_header
            %s255 = sphi 0, %s259
            %p256 = scmp.ge.s32.totalorder %s255, 1
            %s260 = sphi %s1, %s1
            %s261 = sphi [#allocation2], [#allocation2]
          $region47: #{dummy_gnn_forward.1} parent=43 // loop_header_branch
            %258 = sbr.rel (%p256) target = $region51
          $region48: #{dummy_gnn_forward.1} parent=43 // loop_body
            %v262 = vld [vmem:[%s260] sm:$0xff]
            %263 = vst [vmem:[%s261] sm:$0xff] %v262
            %v264 = vld [vmem:[%s260 + $0x8] sm:$0xff]
            %265 = vst [vmem:[%s261 + $0x8] sm:$0xff] %v264
            %v266 = vld [vmem:[%s260 + $0x10] sm:$0xff]
            %267 = vst [vmem:[%s261 + $0x10] sm:$0xff] %v266
            %v268 = vld [vmem:[%s260 + $0x18] sm:$0xff]
            %269 = vst [vmem:[%s261 + $0x18] sm:$0xff] %v268
            %v270 = vld [vmem:[%s260 + $0x20] sm:$0xff]
            %271 = vst [vmem:[%s261 + $0x20] sm:$0xff] %v270
            %v272 = vld [vmem:[%s260 + $0x28] sm:$0xff]
            %273 = vst [vmem:[%s261 + $0x28] sm:$0xff] %v272
            %v274 = vld [vmem:[%s260 + $0x30] sm:$0xff]
            %275 = vst [vmem:[%s261 + $0x30] sm:$0xff] %v274
            %v276 = vld [vmem:[%s260 + $0x38] sm:$0xff]
            %277 = vst [vmem:[%s261 + $0x38] sm:$0xff] %v276
          $region49: #{dummy_gnn_forward.1} parent=43 // loop_footer
            %s259 = sadd.s32 1, %s255
          $region50: #{dummy_gnn_forward.1} parent=43 // loop_footer_branch
            %254 = sbr.rel target = $region46
          $region51: #{dummy_gnn_forward.1} parent=43 // loop_exit
            _
        $region44: #{dummy_gnn_forward.1} parent=39 // pred_fallthru
          _
        // Predicated region
        $region52: #{dummy_gnn_forward.1} parent=39 // pred_check
          _
        $region53: #{dummy_gnn_forward.1} parent=39 // pred_check_branch
          %279 = sbr.rel target = $region55
        $region54: #{dummy_gnn_forward.1} parent=39 // pred_region
          _
        $region55: #{dummy_gnn_forward.1} parent=39 // pred_fallthru
          _
        // Predicated region
        $region56: #{dummy_gnn_forward.1} parent=39 // pred_check
          _
        $region57: #{dummy_gnn_forward.1} parent=39 // pred_check_branch
          %282 = sbr.rel (0) target = $region59
        $region58: #{dummy_gnn_forward.1} parent=39 // pred_region
          %283 = vsyncadd [#allocation5], 1024
        $region59: #{dummy_gnn_forward.1} parent=39 // pred_fallthru
          _
        %v284 = vld [vmem:[%s0] sm:$0xff]
        %v285 = vld [vmem:[%s0 + $0x8] sm:$0xff]
        %v286 = vld [vmem:[%s0 + $0x10] sm:$0xff]
        %v287 = vld [vmem:[%s0 + $0x18] sm:$0xff]
        %v288 = vld [vmem:[%s0 + $0x20] sm:$0xff]
        %v289 = vld [vmem:[%s0 + $0x28] sm:$0xff]
        %v290 = vld [vmem:[%s0 + $0x30] sm:$0xff]
        %v291 = vld [vmem:[%s0 + $0x38] sm:$0xff]
        %v292 = vld [vmem:[%s0 + $0x40] sm:$0xff]
        %v293 = vld [vmem:[%s0 + $0x48] sm:$0xff]
        %v294 = vld [vmem:[%s0 + $0x50] sm:$0xff]
        %v295 = vld [vmem:[%s0 + $0x58] sm:$0xff]
        %v296 = vld [vmem:[%s0 + $0x60] sm:$0xff]
        %v297 = vld [vmem:[%s0 + $0x68] sm:$0xff]
        %v298 = vld [vmem:[%s0 + $0x70] sm:$0xff]
        %v299 = vld [vmem:[%s0 + $0x78] sm:$0xff]
        %300 = vst [vmem:[#allocation3] sm:$0xff] %v284
        %301 = vst [vmem:[#allocation3 + $0x8] sm:$0xff] %v285
        %302 = vst [vmem:[#allocation3 + $0x10] sm:$0xff] %v286
        %303 = vst [vmem:[#allocation3 + $0x18] sm:$0xff] %v287
        %304 = vst [vmem:[#allocation3 + $0x20] sm:$0xff] %v288
        %305 = vst [vmem:[#allocation3 + $0x28] sm:$0xff] %v289
        %306 = vst [vmem:[#allocation3 + $0x30] sm:$0xff] %v290
        %307 = vst [vmem:[#allocation3 + $0x38] sm:$0xff] %v291
        %308 = vst [vmem:[#allocation3 + $0x40] sm:$0xff] %v292
        %309 = vst [vmem:[#allocation3 + $0x48] sm:$0xff] %v293
        %310 = vst [vmem:[#allocation3 + $0x50] sm:$0xff] %v294
        %311 = vst [vmem:[#allocation3 + $0x58] sm:$0xff] %v295
        %312 = vst [vmem:[#allocation3 + $0x60] sm:$0xff] %v296
        %313 = vst [vmem:[#allocation3 + $0x68] sm:$0xff] %v297
        %314 = vst [vmem:[#allocation3 + $0x70] sm:$0xff] %v298
        %315 = vst [vmem:[#allocation3 + $0x78] sm:$0xff] %v299
        %s316 = smul.u32 4, 16
        %s317 = smul.u32 %s316, 1
        %s318 = sshll.u32 %s317, 4
        %319 = dma.done [#allocation5], %s318
      $region40: #{dummy_gnn_forward.1} parent=35 // pred_fallthru
        _
      %p320 = scmp.lt.s32.totalorder %s20, 0
      %s321 = ssub.s32 0, %s20
      %s322 = scalar_select %p320, %s321, %s20
      %s323 = sand.u32 %s322, 1
      %s324 = ssub.s32 0, %s323
      %s325 = scalar_select %p320, %s324, %s323
      %p326 = scmp.ne.s32.totalorder %s325, 0
      %p327 = scmp.lt.s32.totalorder %s325, 0
      %p328 = pnand %p327, %p326
      %p329 = pneg %p328
      %s330 = sadd.s32 %s325, 2
      %s331 = scalar_select %p329, %s330, %s325
      %s332 = smul.u32 %s331, 128
      %s333 = sadd.s32 %s20, 1
      %p334 = scmp.lt.s32.totalorder %s333, 0
      %s335 = ssub.s32 0, %s333
      %s336 = scalar_select %p334, %s335, %s333
      %s337 = sand.u32 %s336, 1
      %s338 = ssub.s32 0, %s337
      %s339 = scalar_select %p334, %s338, %s337
      %p340 = scmp.ne.s32.totalorder %s339, 0
      %p341 = scmp.lt.s32.totalorder %s339, 0
      %p342 = pnand %p341, %p340
      %p343 = pneg %p342
      %s344 = sadd.s32 %s339, 2
      %s345 = scalar_select %p343, %s344, %s339
      %s346 = smul.u32 %s345, 128
      // Predicated region
      $region60: #{dummy_gnn_forward.1} parent=35 // pred_check
        %p347 = pneg %p247
      $region61: #{dummy_gnn_forward.1} parent=35 // pred_check_branch
        %349 = sbr.rel (%p347) target = $region63
      $region62: #{dummy_gnn_forward.1} parent=35 // pred_region
        %s350 = scalar_lea.vmem [#allocation3], %s332
        %v351 = vld [vmem:[%s350] sm:$0xff]
        %v352 = vld [vmem:[%s350 + $0x8] sm:$0xff]
        %v353 = vld [vmem:[%s350 + $0x10] sm:$0xff]
        %v354 = vld [vmem:[%s350 + $0x18] sm:$0xff]
        %v355 = vld [vmem:[%s350 + $0x20] sm:$0xff]
        %v356 = vld [vmem:[%s350 + $0x28] sm:$0xff]
        %v357 = vld [vmem:[%s350 + $0x30] sm:$0xff]
        %v358 = vld [vmem:[%s350 + $0x38] sm:$0xff]
        %v359 = vld [vmem:[%s350 + $0x40] sm:$0xff]
        %v360 = vld [vmem:[%s350 + $0x48] sm:$0xff]
        %v361 = vld [vmem:[%s350 + $0x50] sm:$0xff]
        %v362 = vld [vmem:[%s350 + $0x58] sm:$0xff]
        %v363 = vld [vmem:[%s350 + $0x60] sm:$0xff]
        %v364 = vld [vmem:[%s350 + $0x68] sm:$0xff]
        %v365 = vld [vmem:[%s350 + $0x70] sm:$0xff]
        %v366 = vld [vmem:[%s350 + $0x78] sm:$0xff]
        %v367 = vpack.c.bf16 %v352, %v351
        %v368 = vpack.c.bf16 %v354, %v353
        %v369 = vpack.c.bf16 %v356, %v355
        %v370 = vpack.c.bf16 %v358, %v357
        %v371 = vpack.c.bf16 %v360, %v359
        %v372 = vpack.c.bf16 %v362, %v361
        %v373 = vpack.c.bf16 %v364, %v363
        %v374 = vpack.c.bf16 %v366, %v365
        %v375 = vld [vmem:[%s231] sm:$0xf]
        %v376 = vld [vmem:[%s231 + $0x4] sm:$0xf]
        %v377 = vld [vmem:[%s231 + $0x8] sm:$0xf]
        %v378 = vld [vmem:[%s231 + $0xc] sm:$0xf]
        %v379 = vld [vmem:[%s231 + $0x10] sm:$0xf]
        %v380 = vld [vmem:[%s231 + $0x14] sm:$0xf]
        %v381 = vld [vmem:[%s231 + $0x18] sm:$0xf]
        %v382 = vld [vmem:[%s231 + $0x1c] sm:$0xf]
        %v383 = vld [vmem:[%s231 + $0x20] sm:$0xf]
        %v384 = vld [vmem:[%s231 + $0x24] sm:$0xf]
        %v385 = vld [vmem:[%s231 + $0x28] sm:$0xf]
        %v386 = vld [vmem:[%s231 + $0x2c] sm:$0xf]
        %v387 = vld [vmem:[%s231 + $0x30] sm:$0xf]
        %v388 = vld [vmem:[%s231 + $0x34] sm:$0xf]
        %v389 = vld [vmem:[%s231 + $0x38] sm:$0xf]
        %v390 = vld [vmem:[%s231 + $0x3c] sm:$0xf]
        %v407 = vunpack.c.l.b16 %v375
        %v408 = vunpack.c.l.b16 %v376
        %v409 = vunpack.c.l.b16 %v377
        %v410 = vunpack.c.l.b16 %v378
        %v411 = vunpack.c.l.b16 %v379
        %v412 = vunpack.c.l.b16 %v380
        %v413 = vunpack.c.l.b16 %v381
        %v414 = vunpack.c.l.b16 %v382
        %v415 = vunpack.c.l.b16 %v383
        %v416 = vunpack.c.l.b16 %v384
        %v417 = vunpack.c.l.b16 %v385
        %v418 = vunpack.c.l.b16 %v386
        %v419 = vunpack.c.l.b16 %v387
        %v420 = vunpack.c.l.b16 %v388
        %v421 = vunpack.c.l.b16 %v389
        %v422 = vunpack.c.l.b16 %v390
        %v423 = vpack.c.b16 %v408, %v407
        %v424 = vpack.c.b16 %v410, %v409
        %v425 = vpack.c.b16 %v412, %v411
        %v426 = vpack.c.b16 %v414, %v413
        %v427 = vpack.c.b16 %v416, %v415
        %v428 = vpack.c.b16 %v418, %v417
        %v429 = vpack.c.b16 %v420, %v419
        %v430 = vpack.c.b16 %v422, %v421
        %439 = vmatpush.bf16.msra.mxu0 %v430
        %440 = vmatpush.bf16.msra.mxu0 %v429
        %441 = vmatpush.bf16.msra.mxu0 %v428
        %442 = vmatpush.bf16.msra.mxu0 %v427
        %443 = vmatpush.bf16.msra.mxu0 %v426
        %444 = vmatpush.bf16.msra.mxu0 %v425
        %445 = vmatpush.bf16.msra.mxu0 %v424
        %446 = vmatpush.bf16.msra.mxu0 %v423
        %447 = vmatmul.bf16.gmra.mxu0 %v367
        %v448 = vpop.f32.mrf.mxu0
        %v449 = vadd.f32 0.0, %v448
        %v450 = vpop.f32.mrf.mxu0
        %v451 = vadd.f32 0.0, %v450
        %452 = vmatmul.bf16.gmra.mxu0 %v368
        %v453 = vpop.f32.mrf.mxu0
        %v454 = vadd.f32 0.0, %v453
        %v455 = vpop.f32.mrf.mxu0
        %v456 = vadd.f32 0.0, %v455
        %457 = vmatmul.bf16.gmra.mxu0 %v369
        %v458 = vpop.f32.mrf.mxu0
        %v459 = vadd.f32 0.0, %v458
        %v460 = vpop.f32.mrf.mxu0
        %v461 = vadd.f32 0.0, %v460
        %462 = vmatmul.bf16.gmra.mxu0 %v370
        %v463 = vpop.f32.mrf.mxu0
        %v464 = vadd.f32 0.0, %v463
        %v465 = vpop.f32.mrf.mxu0
        %v466 = vadd.f32 0.0, %v465
        %467 = vmatmul.bf16.gmra.mxu0 %v371
        %v468 = vpop.f32.mrf.mxu0
        %v469 = vadd.f32 0.0, %v468
        %v470 = vpop.f32.mrf.mxu0
        %v471 = vadd.f32 0.0, %v470
        %472 = vmatmul.bf16.gmra.mxu0 %v372
        %v473 = vpop.f32.mrf.mxu0
        %v474 = vadd.f32 0.0, %v473
        %v475 = vpop.f32.mrf.mxu0
        %v476 = vadd.f32 0.0, %v475
        %477 = vmatmul.bf16.gmra.mxu0 %v373
        %v478 = vpop.f32.mrf.mxu0
        %v479 = vadd.f32 0.0, %v478
        %v480 = vpop.f32.mrf.mxu0
        %v481 = vadd.f32 0.0, %v480
        %482 = vmatmul.bf16.gmra.mxu0 %v374
        %v483 = vpop.f32.mrf.mxu0
        %v484 = vadd.f32 0.0, %v483
        %v485 = vpop.f32.mrf.mxu0
        %v486 = vadd.f32 0.0, %v485
        %487 = vdwg.mxu0
        %v488 = vpack.c.bf16 %v449, %v449
        %v489 = vpack.c.bf16 %v451, %v451
        %v490 = vpack.c.bf16 %v454, %v454
        %v491 = vpack.c.bf16 %v456, %v456
        %v492 = vpack.c.bf16 %v459, %v459
        %v493 = vpack.c.bf16 %v461, %v461
        %v494 = vpack.c.bf16 %v464, %v464
        %v495 = vpack.c.bf16 %v466, %v466
        %v496 = vpack.c.bf16 %v469, %v469
        %v497 = vpack.c.bf16 %v471, %v471
        %v498 = vpack.c.bf16 %v474, %v474
        %v499 = vpack.c.bf16 %v476, %v476
        %v500 = vpack.c.bf16 %v479, %v479
        %v501 = vpack.c.bf16 %v481, %v481
        %v502 = vpack.c.bf16 %v484, %v484
        %v503 = vpack.c.bf16 %v486, %v486
        %504 = vst [vmem:[#allocation4] sm:$0xf] %v488
        %505 = vst [vmem:[#allocation4 + $0x4] sm:$0xf] %v489
        %506 = vst [vmem:[#allocation4 + $0x8] sm:$0xf] %v490
        %507 = vst [vmem:[#allocation4 + $0xc] sm:$0xf] %v491
        %508 = vst [vmem:[#allocation4 + $0x10] sm:$0xf] %v492
        %509 = vst [vmem:[#allocation4 + $0x14] sm:$0xf] %v493
        %510 = vst [vmem:[#allocation4 + $0x18] sm:$0xf] %v494
        %511 = vst [vmem:[#allocation4 + $0x1c] sm:$0xf] %v495
        %512 = vst [vmem:[#allocation4 + $0x20] sm:$0xf] %v496
        %513 = vst [vmem:[#allocation4 + $0x24] sm:$0xf] %v497
        %514 = vst [vmem:[#allocation4 + $0x28] sm:$0xf] %v498
        %515 = vst [vmem:[#allocation4 + $0x2c] sm:$0xf] %v499
        %516 = vst [vmem:[#allocation4 + $0x30] sm:$0xf] %v500
        %517 = vst [vmem:[#allocation4 + $0x34] sm:$0xf] %v501
        %518 = vst [vmem:[#allocation4 + $0x38] sm:$0xf] %v502
        %519 = vst [vmem:[#allocation4 + $0x3c] sm:$0xf] %v503
      $region63: #{dummy_gnn_forward.1} parent=35 // pred_fallthru
        _
      %s520 = smul.u32 %s21, 128
      %s521 = sadd.s32 %s332, %s520
      %s522 = scalar_lea.vmem [#allocation3], %s521
      %v523 = vld [vmem:[%s522] sm:$0xff]
      %v524 = vld [vmem:[%s522 + $0x8] sm:$0xff]
      %v525 = vld [vmem:[%s522 + $0x10] sm:$0xff]
      %v526 = vld [vmem:[%s522 + $0x18] sm:$0xff]
      %v527 = vld [vmem:[%s522 + $0x20] sm:$0xff]
      %v528 = vld [vmem:[%s522 + $0x28] sm:$0xff]
      %v529 = vld [vmem:[%s522 + $0x30] sm:$0xff]
      %v530 = vld [vmem:[%s522 + $0x38] sm:$0xff]
      %v531 = vld [vmem:[%s522 + $0x40] sm:$0xff]
      %v532 = vld [vmem:[%s522 + $0x48] sm:$0xff]
      %v533 = vld [vmem:[%s522 + $0x50] sm:$0xff]
      %v534 = vld [vmem:[%s522 + $0x58] sm:$0xff]
      %v535 = vld [vmem:[%s522 + $0x60] sm:$0xff]
      %v536 = vld [vmem:[%s522 + $0x68] sm:$0xff]
      %v537 = vld [vmem:[%s522 + $0x70] sm:$0xff]
      %v538 = vld [vmem:[%s522 + $0x78] sm:$0xff]
      %s539 = sshra.s32 %s520, 3
      %s540 = sand.u32 %s520, 7
      %s541 = smul.addr %s539, 4
      %s542 = scalar_lea.vmem [#allocation2], %s541
      %v543 = vld [vmem:[%s542] sm:$0xf]
      %v544 = vld [vmem:[%s542 + $0x4] sm:$0xf]
      %v545 = vld [vmem:[%s542 + $0x8] sm:$0xf]
      %v546 = vld [vmem:[%s542 + $0xc] sm:$0xf]
      %v547 = vld [vmem:[%s542 + $0x10] sm:$0xf]
      %v548 = vld [vmem:[%s542 + $0x14] sm:$0xf]
      %v549 = vld [vmem:[%s542 + $0x18] sm:$0xf]
      %v550 = vld [vmem:[%s542 + $0x1c] sm:$0xf]
      %v551 = vld [vmem:[%s542 + $0x20] sm:$0xf]
      %v552 = vld [vmem:[%s542 + $0x24] sm:$0xf]
      %v553 = vld [vmem:[%s542 + $0x28] sm:$0xf]
      %v554 = vld [vmem:[%s542 + $0x2c] sm:$0xf]
      %v555 = vld [vmem:[%s542 + $0x30] sm:$0xf]
      %v556 = vld [vmem:[%s542 + $0x34] sm:$0xf]
      %v557 = vld [vmem:[%s542 + $0x38] sm:$0xf]
      %v558 = vld [vmem:[%s542 + $0x3c] sm:$0xf]
      %v559 = vld [vmem:[#allocation4] sm:$0xf]
      %v560 = vld [vmem:[#allocation4 + $0x4] sm:$0xf]
      %v561 = vld [vmem:[#allocation4 + $0x8] sm:$0xf]
      %v562 = vld [vmem:[#allocation4 + $0xc] sm:$0xf]
      %v563 = vld [vmem:[#allocation4 + $0x10] sm:$0xf]
      %v564 = vld [vmem:[#allocation4 + $0x14] sm:$0xf]
      %v565 = vld [vmem:[#allocation4 + $0x18] sm:$0xf]
      %v566 = vld [vmem:[#allocation4 + $0x1c] sm:$0xf]
      %v567 = vld [vmem:[#allocation4 + $0x20] sm:$0xf]
      %v568 = vld [vmem:[#allocation4 + $0x24] sm:$0xf]
      %v569 = vld [vmem:[#allocation4 + $0x28] sm:$0xf]
      %v570 = vld [vmem:[#allocation4 + $0x2c] sm:$0xf]
      %v571 = vld [vmem:[#allocation4 + $0x30] sm:$0xf]
      %v572 = vld [vmem:[#allocation4 + $0x34] sm:$0xf]
      %v573 = vld [vmem:[#allocation4 + $0x38] sm:$0xf]
      %v574 = vld [vmem:[#allocation4 + $0x3c] sm:$0xf]
      %v575 = vpack.c.bf16 %v524, %v523
      %v576 = vpack.c.bf16 %v526, %v525
      %v577 = vpack.c.bf16 %v528, %v527
      %v578 = vpack.c.bf16 %v530, %v529
      %v579 = vpack.c.bf16 %v532, %v531
      %v580 = vpack.c.bf16 %v534, %v533
      %v581 = vpack.c.bf16 %v536, %v535
      %v582 = vpack.c.bf16 %v538, %v537
      %v583 = vld [vmem:[%s236] sm:$0xf]
      %v584 = vld [vmem:[%s236 + $0x4] sm:$0xf]
      %v585 = vld [vmem:[%s236 + $0x8] sm:$0xf]
      %v586 = vld [vmem:[%s236 + $0xc] sm:$0xf]
      %v587 = vld [vmem:[%s236 + $0x10] sm:$0xf]
      %v588 = vld [vmem:[%s236 + $0x14] sm:$0xf]
      %v589 = vld [vmem:[%s236 + $0x18] sm:$0xf]
      %v590 = vld [vmem:[%s236 + $0x1c] sm:$0xf]
      %v591 = vld [vmem:[%s236 + $0x20] sm:$0xf]
      %v592 = vld [vmem:[%s236 + $0x24] sm:$0xf]
      %v593 = vld [vmem:[%s236 + $0x28] sm:$0xf]
      %v594 = vld [vmem:[%s236 + $0x2c] sm:$0xf]
      %v595 = vld [vmem:[%s236 + $0x30] sm:$0xf]
      %v596 = vld [vmem:[%s236 + $0x34] sm:$0xf]
      %v597 = vld [vmem:[%s236 + $0x38] sm:$0xf]
      %v598 = vld [vmem:[%s236 + $0x3c] sm:$0xf]
      %v615 = vunpack.c.l.b16 %v583
      %v616 = vunpack.c.l.b16 %v584
      %v617 = vunpack.c.l.b16 %v585
      %v618 = vunpack.c.l.b16 %v586
      %v619 = vunpack.c.l.b16 %v587
      %v620 = vunpack.c.l.b16 %v588
      %v621 = vunpack.c.l.b16 %v589
      %v622 = vunpack.c.l.b16 %v590
      %v623 = vunpack.c.l.b16 %v591
      %v624 = vunpack.c.l.b16 %v592
      %v625 = vunpack.c.l.b16 %v593
      %v626 = vunpack.c.l.b16 %v594
      %v627 = vunpack.c.l.b16 %v595
      %v628 = vunpack.c.l.b16 %v596
      %v629 = vunpack.c.l.b16 %v597
      %v630 = vunpack.c.l.b16 %v598
      %v631 = vpack.c.b16 %v616, %v615
      %v632 = vpack.c.b16 %v618, %v617
      %v633 = vpack.c.b16 %v620, %v619
      %v634 = vpack.c.b16 %v622, %v621
      %v635 = vpack.c.b16 %v624, %v623
      %v636 = vpack.c.b16 %v626, %v625
      %v637 = vpack.c.b16 %v628, %v627
      %v638 = vpack.c.b16 %v630, %v629
      %647 = vmatpush.bf16.msra.mxu0 %v638
      %648 = vmatpush.bf16.msra.mxu0 %v637
      %649 = vmatpush.bf16.msra.mxu0 %v636
      %650 = vmatpush.bf16.msra.mxu0 %v635
      %651 = vmatpush.bf16.msra.mxu0 %v634
      %652 = vmatpush.bf16.msra.mxu0 %v633
      %653 = vmatpush.bf16.msra.mxu0 %v632
      %654 = vmatpush.bf16.msra.mxu0 %v631
      %655 = vmatmul.bf16.gmra.mxu0 %v575
      %v656 = vpop.f32.mrf.mxu0
      %v657 = vadd.f32 0.0, %v656
      %v658 = vpop.f32.mrf.mxu0
      %v659 = vadd.f32 0.0, %v658
      %660 = vmatmul.bf16.gmra.mxu0 %v576
      %v661 = vpop.f32.mrf.mxu0
      %v662 = vadd.f32 0.0, %v661
      %v663 = vpop.f32.mrf.mxu0
      %v664 = vadd.f32 0.0, %v663
      %665 = vmatmul.bf16.gmra.mxu0 %v577
      %v666 = vpop.f32.mrf.mxu0
      %v667 = vadd.f32 0.0, %v666
      %v668 = vpop.f32.mrf.mxu0
      %v669 = vadd.f32 0.0, %v668
      %670 = vmatmul.bf16.gmra.mxu0 %v578
      %v671 = vpop.f32.mrf.mxu0
      %v672 = vadd.f32 0.0, %v671
      %v673 = vpop.f32.mrf.mxu0
      %v674 = vadd.f32 0.0, %v673
      %675 = vmatmul.bf16.gmra.mxu0 %v579
      %v676 = vpop.f32.mrf.mxu0
      %v677 = vadd.f32 0.0, %v676
      %v678 = vpop.f32.mrf.mxu0
      %v679 = vadd.f32 0.0, %v678
      %680 = vmatmul.bf16.gmra.mxu0 %v580
      %v681 = vpop.f32.mrf.mxu0
      %v682 = vadd.f32 0.0, %v681
      %v683 = vpop.f32.mrf.mxu0
      %v684 = vadd.f32 0.0, %v683
      %685 = vmatmul.bf16.gmra.mxu0 %v581
      %v686 = vpop.f32.mrf.mxu0
      %v687 = vadd.f32 0.0, %v686
      %v688 = vpop.f32.mrf.mxu0
      %v689 = vadd.f32 0.0, %v688
      %690 = vmatmul.bf16.gmra.mxu0 %v582
      %v691 = vpop.f32.mrf.mxu0
      %v692 = vadd.f32 0.0, %v691
      %v693 = vpop.f32.mrf.mxu0
      %v694 = vadd.f32 0.0, %v693
      %695 = vdwg.mxu0
      %v712 = vunpack.c.l.b16 %v543
      %v713 = vunpack.c.l.b16 %v544
      %v714 = vunpack.c.l.b16 %v545
      %v715 = vunpack.c.l.b16 %v546
      %v716 = vunpack.c.l.b16 %v547
      %v717 = vunpack.c.l.b16 %v548
      %v718 = vunpack.c.l.b16 %v549
      %v719 = vunpack.c.l.b16 %v550
      %v720 = vunpack.c.l.b16 %v551
      %v721 = vunpack.c.l.b16 %v552
      %v722 = vunpack.c.l.b16 %v553
      %v723 = vunpack.c.l.b16 %v554
      %v724 = vunpack.c.l.b16 %v555
      %v725 = vunpack.c.l.b16 %v556
      %v726 = vunpack.c.l.b16 %v557
      %v727 = vunpack.c.l.b16 %v558
      %v728 = vpack.c.b16 %v713, %v712
      %v729 = vpack.c.b16 %v715, %v714
      %v730 = vpack.c.b16 %v717, %v716
      %v731 = vpack.c.b16 %v719, %v718
      %v732 = vpack.c.b16 %v721, %v720
      %v733 = vpack.c.b16 %v723, %v722
      %v734 = vpack.c.b16 %v725, %v724
      %v735 = vpack.c.b16 %v727, %v726
      %v760 = vunpack.c.l.b16 %v559
      %v761 = vunpack.c.l.b16 %v560
      %v762 = vunpack.c.l.b16 %v561
      %v763 = vunpack.c.l.b16 %v562
      %v764 = vunpack.c.l.b16 %v563
      %v765 = vunpack.c.l.b16 %v564
      %v766 = vunpack.c.l.b16 %v565
      %v767 = vunpack.c.l.b16 %v566
      %v768 = vunpack.c.l.b16 %v567
      %v769 = vunpack.c.l.b16 %v568
      %v770 = vunpack.c.l.b16 %v569
      %v771 = vunpack.c.l.b16 %v570
      %v772 = vunpack.c.l.b16 %v571
      %v773 = vunpack.c.l.b16 %v572
      %v774 = vunpack.c.l.b16 %v573
      %v775 = vunpack.c.l.b16 %v574
      %v776 = vpack.c.b16 %v761, %v760
      %v777 = vpack.c.b16 %v763, %v762
      %v778 = vpack.c.b16 %v765, %v764
      %v779 = vpack.c.b16 %v767, %v766
      %v780 = vpack.c.b16 %v769, %v768
      %v781 = vpack.c.b16 %v771, %v770
      %v782 = vpack.c.b16 %v773, %v772
      %v783 = vpack.c.b16 %v775, %v774
      %792 = vmatpush.bf16.msra.mxu0 %v783
      %793 = vmatpush.bf16.msra.mxu0 %v782
      %794 = vmatpush.bf16.msra.mxu0 %v781
      %795 = vmatpush.bf16.msra.mxu0 %v780
      %796 = vmatpush.bf16.msra.mxu0 %v779
      %797 = vmatpush.bf16.msra.mxu0 %v778
      %798 = vmatpush.bf16.msra.mxu0 %v777
      %799 = vmatpush.bf16.msra.mxu0 %v776
      %800 = vmatmul.bf16.gmra.mxu0 %v728
      %v801 = vpop.f32.mrf.mxu0
      %v802 = vadd.f32 %v657, %v801
      %v803 = vpop.f32.mrf.mxu0
      %v804 = vadd.f32 %v659, %v803
      %805 = vmatmul.bf16.gmra.mxu0 %v729
      %v806 = vpop.f32.mrf.mxu0
      %v807 = vadd.f32 %v662, %v806
      %v808 = vpop.f32.mrf.mxu0
      %v809 = vadd.f32 %v664, %v808
      %810 = vmatmul.bf16.gmra.mxu0 %v730
      %v811 = vpop.f32.mrf.mxu0
      %v812 = vadd.f32 %v667, %v811
      %v813 = vpop.f32.mrf.mxu0
      %v814 = vadd.f32 %v669, %v813
      %815 = vmatmul.bf16.gmra.mxu0 %v731
      %v816 = vpop.f32.mrf.mxu0
      %v817 = vadd.f32 %v672, %v816
      %v818 = vpop.f32.mrf.mxu0
      %v819 = vadd.f32 %v674, %v818
      %820 = vmatmul.bf16.gmra.mxu0 %v732
      %v821 = vpop.f32.mrf.mxu0
      %v822 = vadd.f32 %v677, %v821
      %v823 = vpop.f32.mrf.mxu0
      %v824 = vadd.f32 %v679, %v823
      %825 = vmatmul.bf16.gmra.mxu0 %v733
      %v826 = vpop.f32.mrf.mxu0
      %v827 = vadd.f32 %v682, %v826
      %v828 = vpop.f32.mrf.mxu0
      %v829 = vadd.f32 %v684, %v828
      %830 = vmatmul.bf16.gmra.mxu0 %v734
      %v831 = vpop.f32.mrf.mxu0
      %v832 = vadd.f32 %v687, %v831
      %v833 = vpop.f32.mrf.mxu0
      %v834 = vadd.f32 %v689, %v833
      %835 = vmatmul.bf16.gmra.mxu0 %v735
      %v836 = vpop.f32.mrf.mxu0
      %v837 = vadd.f32 %v692, %v836
      %v838 = vpop.f32.mrf.mxu0
      %v839 = vadd.f32 %v694, %v838
      %840 = vdwg.mxu0
      %v841 = vld [vmem:[%s239] sm:$0x1]
      %v843 = vperm.slane %v841, 0
      %v845 = vadd.f32 %v802, %v843
      %v846 = vadd.f32 %v804, %v843
      %v847 = vadd.f32 %v807, %v843
      %v848 = vadd.f32 %v809, %v843
      %v849 = vadd.f32 %v812, %v843
      %v850 = vadd.f32 %v814, %v843
      %v851 = vadd.f32 %v817, %v843
      %v852 = vadd.f32 %v819, %v843
      %v853 = vadd.f32 %v822, %v843
      %v854 = vadd.f32 %v824, %v843
      %v855 = vadd.f32 %v827, %v843
      %v856 = vadd.f32 %v829, %v843
      %v857 = vadd.f32 %v832, %v843
      %v858 = vadd.f32 %v834, %v843
      %v859 = vadd.f32 %v837, %v843
      %v860 = vadd.f32 %v839, %v843
      %p861 = scmp.lt.s32.totalorder %s20, 2
      // Predicated region
      $region64: #{dummy_gnn_forward.1} parent=35 // pred_check
        %p862 = pneg %p861
      $region65: #{dummy_gnn_forward.1} parent=35 // pred_check_branch
        %864 = sbr.rel (%p862) target = $region67
      $region66: #{dummy_gnn_forward.1} parent=35 // pred_region
        %v865 = vmax.f32 %v845, 0.0
        %v866 = vmax.f32 %v846, 0.0
        %v867 = vmax.f32 %v847, 0.0
        %v868 = vmax.f32 %v848, 0.0
        %v869 = vmax.f32 %v849, 0.0
        %v870 = vmax.f32 %v850, 0.0
        %v871 = vmax.f32 %v851, 0.0
        %v872 = vmax.f32 %v852, 0.0
        %v873 = vmax.f32 %v853, 0.0
        %v874 = vmax.f32 %v854, 0.0
        %v875 = vmax.f32 %v855, 0.0
        %v876 = vmax.f32 %v856, 0.0
        %v877 = vmax.f32 %v857, 0.0
        %v878 = vmax.f32 %v858, 0.0
        %v879 = vmax.f32 %v859, 0.0
        %v880 = vmax.f32 %v860, 0.0
        %s881 = sadd.s32 %s346, %s520
        %s882 = scalar_lea.vmem [#allocation3], %s881
        %883 = vst [vmem:[%s882] sm:$0xff] %v865
        %884 = vst [vmem:[%s882 + $0x8] sm:$0xff] %v866
        %885 = vst [vmem:[%s882 + $0x10] sm:$0xff] %v867
        %886 = vst [vmem:[%s882 + $0x18] sm:$0xff] %v868
        %887 = vst [vmem:[%s882 + $0x20] sm:$0xff] %v869
        %888 = vst [vmem:[%s882 + $0x28] sm:$0xff] %v870
        %889 = vst [vmem:[%s882 + $0x30] sm:$0xff] %v871
        %890 = vst [vmem:[%s882 + $0x38] sm:$0xff] %v872
        %891 = vst [vmem:[%s882 + $0x40] sm:$0xff] %v873
        %892 = vst [vmem:[%s882 + $0x48] sm:$0xff] %v874
        %893 = vst [vmem:[%s882 + $0x50] sm:$0xff] %v875
        %894 = vst [vmem:[%s882 + $0x58] sm:$0xff] %v876
        %895 = vst [vmem:[%s882 + $0x60] sm:$0xff] %v877
        %896 = vst [vmem:[%s882 + $0x68] sm:$0xff] %v878
        %897 = vst [vmem:[%s882 + $0x70] sm:$0xff] %v879
        %898 = vst [vmem:[%s882 + $0x78] sm:$0xff] %v880
        %899 = vst [vmem:[%s244] sm:$0xff] %v865
        %900 = vst [vmem:[%s244 + $0x8] sm:$0xff] %v866
        %901 = vst [vmem:[%s244 + $0x10] sm:$0xff] %v867
        %902 = vst [vmem:[%s244 + $0x18] sm:$0xff] %v868
        %903 = vst [vmem:[%s244 + $0x20] sm:$0xff] %v869
        %904 = vst [vmem:[%s244 + $0x28] sm:$0xff] %v870
        %905 = vst [vmem:[%s244 + $0x30] sm:$0xff] %v871
        %906 = vst [vmem:[%s244 + $0x38] sm:$0xff] %v872
        %907 = vst [vmem:[%s244 + $0x40] sm:$0xff] %v873
        %908 = vst [vmem:[%s244 + $0x48] sm:$0xff] %v874
        %909 = vst [vmem:[%s244 + $0x50] sm:$0xff] %v875
        %910 = vst [vmem:[%s244 + $0x58] sm:$0xff] %v876
        %911 = vst [vmem:[%s244 + $0x60] sm:$0xff] %v877
        %912 = vst [vmem:[%s244 + $0x68] sm:$0xff] %v878
        %913 = vst [vmem:[%s244 + $0x70] sm:$0xff] %v879
        %914 = vst [vmem:[%s244 + $0x78] sm:$0xff] %v880
      $region67: #{dummy_gnn_forward.1} parent=35 // pred_fallthru
        _
      %p915 = scmp.eq.s32.totalorder %s20, 2
      // Predicated region
      $region68: #{dummy_gnn_forward.1} parent=35 // pred_check
        %p916 = pneg %p915
      $region69: #{dummy_gnn_forward.1} parent=35 // pred_check_branch
        %918 = sbr.rel (%p916) target = $region71
      $region70: #{dummy_gnn_forward.1} parent=35 // pred_region
        %919 = vst [vmem:[%s244] sm:$0xff] %v845
        %920 = vst [vmem:[%s244 + $0x8] sm:$0xff] %v846
        %921 = vst [vmem:[%s244 + $0x10] sm:$0xff] %v847
        %922 = vst [vmem:[%s244 + $0x18] sm:$0xff] %v848
        %923 = vst [vmem:[%s244 + $0x20] sm:$0xff] %v849
        %924 = vst [vmem:[%s244 + $0x28] sm:$0xff] %v850
        %925 = vst [vmem:[%s244 + $0x30] sm:$0xff] %v851
        %926 = vst [vmem:[%s244 + $0x38] sm:$0xff] %v852
        %927 = vst [vmem:[%s244 + $0x40] sm:$0xff] %v853
        %928 = vst [vmem:[%s244 + $0x48] sm:$0xff] %v854
        %929 = vst [vmem:[%s244 + $0x50] sm:$0xff] %v855
        %930 = vst [vmem:[%s244 + $0x58] sm:$0xff] %v856
        %931 = vst [vmem:[%s244 + $0x60] sm:$0xff] %v857
        %932 = vst [vmem:[%s244 + $0x68] sm:$0xff] %v858
        %933 = vst [vmem:[%s244 + $0x70] sm:$0xff] %v859
        %934 = vst [vmem:[%s244 + $0x78] sm:$0xff] %v860
      $region71: #{dummy_gnn_forward.1} parent=35 // pred_fallthru
        _
      %s935 = smul.u32 16, %s21
      %p936 = scmp.lt.s32.totalorder %s935, 15
      %s937 = scalar_select %p936, %s935, 15
      %s938 = smul.addr %s937, 8
      %s939 = scalar_lea.vmem %s5, %s938
      // Predicated region
      $region72: #{dummy_gnn_forward.1} parent=35 // pred_check
        %p940 = pneg %p145
      $region73: #{dummy_gnn_forward.1} parent=35 // pred_check_branch
        %942 = sbr.rel (%p940) target = $region75
      $region74: #{dummy_gnn_forward.1} parent=35 // pred_region
        %s943 = smul.u32 16, %s21
      $region75: #{dummy_gnn_forward.1} parent=35 // pred_fallthru
        _
      // Predicated region
      $region76: #{dummy_gnn_forward.1} parent=35 // pred_check
        %p944 = pneg %p145
      $region77: #{dummy_gnn_forward.1} parent=35 // pred_check_branch
        %946 = sbr.rel (%p944) target = $region79
      $region78: #{dummy_gnn_forward.1} parent=35 // pred_region
        %s947 = smul.u32 16, %s21
        %p948 = scmp.lt.s32.totalorder %s947, 15
        %s949 = scalar_select %p948, %s947, 15
        %s950 = smul.addr %s949, 8
        %s951 = scalar_lea.vmem %s5, %s950
      $region79: #{dummy_gnn_forward.1} parent=35 // pred_fallthru
        _
    $region36: #{dummy_gnn_forward.1} parent=5 // pred_fallthru
      _
    %p952 = scmp.le.s32.totalorder 2, %s11
    // Predicated region
    $region80: #{dummy_gnn_forward.1} parent=5 // pred_check
      %p953 = pneg %p952
    $region81: #{dummy_gnn_forward.1} parent=5 // pred_check_branch
      %955 = sbr.rel (%p953) target = $region83
    $region82: #{dummy_gnn_forward.1} parent=5 // pred_region
      %s956 = ssub.s32 %s11, 2
    $region83: #{dummy_gnn_forward.1} parent=5 // pred_fallthru
      _
  $region6: #{dummy_gnn_forward.1} parent=0 // loop_footer
    %s15 = sadd.s32 1, %s11
  $region7: #{dummy_gnn_forward.1} parent=0 // loop_footer_branch
    %10 = sbr.rel target = $region3
  $region8: #{dummy_gnn_forward.1} parent=0 // loop_exit
    _
  %957 = vsyncmov [#allocation5]
  %s958 = vpop.sfrf %957
  %p959 = scmp.eq.s32.totalorder %s958, 0
  %p960 = pneg %p959
  %962 = shalt.err (%p960)

</llo_original>
